<compile_context>
chip_gen: v5e
topology: v5e:2x2
jax: 0.10.0
libtpu: 0.0.40
codegen_flags: <defaults>
</compile_context>

<pallas_src>
import math
from functools import partial

import jax
import jax.numpy as jnp
import numpy as np
from jax.experimental import pallas as pl
from jax.experimental.pallas import tpu as pltpu

_MAX_FOLD = 16  # cap on rows folded per output row (covers every dim % 8 == 0)


def _pos_enc_kernel(time_ref, coef_ref, out_ref, *, k: int):
    """time_ref: (tm, k) f32; coef_ref: (k+1, W) f32 (rows 0..k-1 = per-fold masked freqs,
    row k = phase); out_ref: (tm, W)."""
    t = time_ref[...]                                # (tm, k)
    args = coef_ref[k:k + 1, :]                      # (1, W) phase row (broadcasts)
    for j in range(k):                               # k VPU FMAs; freq of other folds is 0
        args = args + t[:, j:j + 1] * coef_ref[j:j + 1, :]
    # Single transcendental, single full-width lane-dense store.
    out_ref[...] = jnp.sin(args).astype(out_ref.dtype)


def positional_encoding(time: jax.Array, dim: int, *, out_dtype=jnp.float32) -> jax.Array:
    """time: (B,) float array -> (B, dim) sinusoidal embedding (matches the PyTorch module)."""
    b = time.shape[0]
    half = dim // 2
    if half < 2:
        # Reference divides by (half - 1); half == 1 would divide by zero there too.
        raise ValueError("PositionalEncoding requires dim >= 4")

    # --- trace-time constants -------------------------------------------------------------
    scale = math.log(10000.0) / (half - 1)
    freqs = np.exp(-scale * np.arange(half, dtype=np.float64)).astype(np.float32)  # (half,)

    base_freq = np.zeros((dim,), np.float32)
    base_freq[:half] = freqs
    base_freq[half:2 * half] = freqs                 # cos half shares the freqs
    base_phase = np.zeros((dim,), np.float32)
    base_phase[half:2 * half] = np.float32(np.pi / 2)  # cos(x) = sin(x + pi/2); pad col stays 0

    # --- fold factor: make the output row width a multiple of 128 lanes --------------------
    if dim % 128 == 0:
        k = 1
    else:
        k = 128 // math.gcd(dim, 128)
        if k > _MAX_FOLD:                            # e.g. odd dims: fall back to direct layout
            k = 1
    W = k * dim

    coef = np.zeros((k + 1, W), np.float32)
    for j in range(k):
        coef[j, j * dim:(j + 1) * dim] = base_freq   # masked so fold j only sees its own time
    coef[k, :] = np.tile(base_phase, k)
    coef = jnp.asarray(coef)

    # --- tile sizing (VMEM-byte budget, not a row cap) --------------------------------------
    rows = -(-b // k)                                # folded rows needed
    rows8 = ((rows + 7) // 8) * 8
    budget_bytes = 2 << 20                           # ~2 MiB per buffer side
    per_row_bytes = 4 * W + 512                      # output row + 128-lane-padded time row
    tm = max(8, (budget_bytes // per_row_bytes) // 8 * 8)
    tm = min(tm, rows8)
    if rows8 >= 16:                                  # v7x: keep >= 2 grid steps for both TCs
        tm = min(tm, ((rows8 // 2) + 7) // 8 * 8)
    tm = max(8, tm)

    rows_pad = ((rows + tm - 1) // tm) * tm
    grid_n = rows_pad // tm

    # --- inputs ----------------------------------------------------------------------------
    t_flat = time.astype(jnp.float32).reshape(-1)
    total = rows_pad * k
    if total != b:
        t_flat = jnp.pad(t_flat, (0, total - b))
    time2d = t_flat.reshape(rows_pad, k)

    out = pl.pallas_call(
        partial(_pos_enc_kernel, k=k),
        out_shape=jax.ShapeDtypeStruct((rows_pad, W), out_dtype),
        grid=(grid_n,),
        in_specs=[
            pl.BlockSpec((tm, k), lambda i: (i, 0)),
            pl.BlockSpec((k + 1, W), lambda i: (0, 0)),
        ],
        out_specs=pl.BlockSpec((tm, W), lambda i: (i, 0)),
        compiler_params=pltpu.CompilerParams(
            dimension_semantics=("parallel",),       # shard batch tiles across TCs on v7x
            vmem_limit_bytes=32 * 1024 * 1024,
        ),
        cost_estimate=pl.CostEstimate(
            flops=2 * rows_pad * W * k,
            transcendentals=rows_pad * W,
            bytes_accessed=rows_pad * k * 4 + (k + 1) * W * 4 + rows_pad * W * 4,
        ),
    )(time2d, coef)

    out = out.reshape(rows_pad * k, dim)
    return out[:b] if rows_pad * k != b else out


def _reference(time, dim):
    half = dim // 2
    pe = math.log(10000.0) / (half - 1)
    pe = jnp.exp(jnp.arange(half, dtype=jnp.float32) * -pe)
    pe = time.astype(jnp.float32)[:, None] * pe[None, :]
    pe = jnp.concatenate((jnp.sin(pe), jnp.cos(pe)), axis=-1)
    if pe.shape[1] < dim:
        pe = jnp.concatenate([pe, jnp.zeros((pe.shape[0], 1), jnp.float32)], axis=1)
    return pe


if __name__ == "__main__":
    # Tolerance note: cos is computed as sin(x + pi/2); for time*freq up to ~1000 the fp32 phase
    # add contributes ~3e-5 absolute error, so we check against atol=1e-4 (well within fp32 use).
    ATOL, RTOL = 1e-4, 1e-5

    # Case 1: even dim < 128 (folded lane-dense path, k = 4), single grid step.
    B, DIM = 8, 32
    time = jax.random.uniform(jax.random.PRNGKey(0), (B,), dtype=jnp.float32,
                              minval=0.0, maxval=1000.0)
    out = jax.block_until_ready(positional_encoding(time, DIM))
    ref = _reference(time, DIM)
    assert out.shape == (B, DIM), out.shape
    assert jnp.allclose(out, ref, atol=ATOL, rtol=RTOL), "mismatch vs reference (dim=32)"

    # Case 2: odd dim (zero-pad column, no-fold fallback path) and batch not a multiple of 8.
    B2, DIM2 = 10, 33
    time2 = jax.random.uniform(jax.random.PRNGKey(1), (B2,), dtype=jnp.float32,
                               minval=0.0, maxval=1000.0)
    out2 = jax.block_until_ready(positional_encoding(time2, DIM2))
    ref2 = _reference(time2, DIM2)
    assert out2.shape == (B2, DIM2), out2.shape
    assert jnp.allclose(out2, ref2, atol=ATOL, rtol=RTOL), "mismatch vs reference (dim=33)"

    # Case 3: fold k = 2, multi-step grid (exercises pipelining + dual-TC sharding path).
    B3, DIM3 = 100, 64
    time3 = jax.random.uniform(jax.random.PRNGKey(2), (B3,), dtype=jnp.float32,
                               minval=0.0, maxval=1000.0)
    out3 = jax.block_until_ready(positional_encoding(time3, DIM3))
    ref3 = _reference(time3, DIM3)
    assert out3.shape == (B3, DIM3), out3.shape
    assert jnp.allclose(out3, ref3, atol=ATOL, rtol=RTOL), "mismatch vs reference (dim=64)"

    print("KERNEL_OK")
</pallas_src>

<mosaic_0001>
module attributes {stable_mosaic.version = 11 : i64} {
  func.func @_pos_enc_kernel(%arg0: i32, %arg1: memref<8x4xf32, #tpu.memory_space<vmem>>, %arg2: memref<5x128xf32, #tpu.memory_space<vmem>>, %arg3: memref<8x128xf32, #tpu.memory_space<vmem>>) attributes {dimension_semantics = [#tpu.dimension_semantics<parallel>], iteration_bounds = array<i64: 1>, scalar_prefetch = 0 : i64, scratch_operands = 0 : i64, tpu.core_type = #tpu.core_type<tc>, window_params = [{transform_indices = @transform_0, window_bounds = array<i64: 8, 4>}, {pipeline_mode = #tpu.pipeline_mode<synchronous>, transform_indices = @transform_1, window_bounds = array<i64: 5, 128>}, {transform_indices = @transform_2, window_bounds = array<i64: 8, 128>}]} {
    %c0 = arith.constant 0 : index
    %c0_0 = arith.constant 0 : index
    %0 = vector.load %arg1[%c0, %c0_0] : memref<8x4xf32, #tpu.memory_space<vmem>>, vector<8x4xf32>
    %c4 = arith.constant 4 : index
    %c0_1 = arith.constant 0 : index
    %1 = vector.load %arg2[%c4, %c0_1] : memref<5x128xf32, #tpu.memory_space<vmem>>, vector<1x128xf32>
    %2 = vector.extract_strided_slice %0 {offsets = [0, 0], sizes = [8, 1], strides = [1, 1]} : vector<8x4xf32> to vector<8x1xf32>
    %c0_2 = arith.constant 0 : index
    %c0_3 = arith.constant 0 : index
    %3 = vector.load %arg2[%c0_2, %c0_3] : memref<5x128xf32, #tpu.memory_space<vmem>>, vector<1x128xf32>
    %4 = vector.broadcast %2 : vector<8x1xf32> to vector<8x128xf32>
    %5 = vector.broadcast %3 : vector<1x128xf32> to vector<8x128xf32>
    %6 = arith.mulf %4, %5 : vector<8x128xf32>
    %7 = vector.broadcast %1 : vector<1x128xf32> to vector<8x128xf32>
    %8 = arith.addf %7, %6 : vector<8x128xf32>
    %9 = vector.extract_strided_slice %0 {offsets = [0, 1], sizes = [8, 1], strides = [1, 1]} : vector<8x4xf32> to vector<8x1xf32>
    %c1 = arith.constant 1 : index
    %c0_4 = arith.constant 0 : index
    %10 = vector.load %arg2[%c1, %c0_4] : memref<5x128xf32, #tpu.memory_space<vmem>>, vector<1x128xf32>
    %11 = vector.broadcast %9 : vector<8x1xf32> to vector<8x128xf32>
    %12 = vector.broadcast %10 : vector<1x128xf32> to vector<8x128xf32>
    %13 = arith.mulf %11, %12 : vector<8x128xf32>
    %14 = arith.addf %8, %13 : vector<8x128xf32>
    %15 = vector.extract_strided_slice %0 {offsets = [0, 2], sizes = [8, 1], strides = [1, 1]} : vector<8x4xf32> to vector<8x1xf32>
    %c2 = arith.constant 2 : index
    %c0_5 = arith.constant 0 : index
    %16 = vector.load %arg2[%c2, %c0_5] : memref<5x128xf32, #tpu.memory_space<vmem>>, vector<1x128xf32>
    %17 = vector.broadcast %15 : vector<8x1xf32> to vector<8x128xf32>
    %18 = vector.broadcast %16 : vector<1x128xf32> to vector<8x128xf32>
    %19 = arith.mulf %17, %18 : vector<8x128xf32>
    %20 = arith.addf %14, %19 : vector<8x128xf32>
    %21 = vector.extract_strided_slice %0 {offsets = [0, 3], sizes = [8, 1], strides = [1, 1]} : vector<8x4xf32> to vector<8x1xf32>
    %c3 = arith.constant 3 : index
    %c0_6 = arith.constant 0 : index
    %22 = vector.load %arg2[%c3, %c0_6] : memref<5x128xf32, #tpu.memory_space<vmem>>, vector<1x128xf32>
    %23 = vector.broadcast %21 : vector<8x1xf32> to vector<8x128xf32>
    %24 = vector.broadcast %22 : vector<1x128xf32> to vector<8x128xf32>
    %25 = arith.mulf %23, %24 : vector<8x128xf32>
    %26 = arith.addf %20, %25 : vector<8x128xf32>
    %27 = math.sin %26 : vector<8x128xf32>
    %c0_7 = arith.constant 0 : index
    %c0_8 = arith.constant 0 : index
    %28 = vector.load %arg3[%c0_7, %c0_8] : memref<8x128xf32, #tpu.memory_space<vmem>>, vector<8x128xf32>
    tpu.vector_store %arg3[%c0_7, %c0_8], %27 {strides = array<i32>} : memref<8x128xf32, #tpu.memory_space<vmem>>, vector<8x128xf32>,
    return
  }
  func.func @transform_0(%arg0: i32) -> (i32, i32) {
    %c0_i32 = arith.constant 0 : i32
    %c0_i32_0 = arith.constant 0 : i32
    return %arg0, %c0_i32 : i32, i32
  }
  func.func @transform_1(%arg0: i32) -> (i32, i32) {
    %c0_i32 = arith.constant 0 : i32
    %c0_i32_0 = arith.constant 0 : i32
    %c0_i32_1 = arith.constant 0 : i32
    return %c0_i32, %c0_i32_0 : i32, i32
  }
  func.func @transform_2(%arg0: i32) -> (i32, i32) {
    %c0_i32 = arith.constant 0 : i32
    %c0_i32_0 = arith.constant 0 : i32
    return %arg0, %c0_i32 : i32, i32
  }
}

</mosaic_0001>

<llo_original>
// kernel: tpu_custom_call.1
$region0: #{tpu_custom_call.1}
  #allocation0 [shape = 'u32[]', space=smem, size = 0x4, offset = 0x4, fixed_abs, tag = 'smem constant byte address 0x4 - core index']
  #allocation1 [shape = 'u32[72,128]{1,0:T(1,128)}', space=vmem, size = 0x9000, scoped, tag = 'internal scratch']
  %s0 = inlined_call_operand.vmem [shape: f32[8,4], index: 0, kind: input, shape index: {}]
  %s1 = inlined_call_operand.vmem [shape: f32[5,128], index: 1, kind: input, shape index: {}]
  %s2 = inlined_call_operand.hbm [shape: f32[8,128], index: 2, kind: output, shape index: {}]
  %s3 = sld [smem:[#allocation0]]
  $region18: #{tpu_custom_call.1} parent=0
    _
  %s5 = ssub.s32 1, %s3
  %s6 = scalar_select 0, %s5, %s3
  $region1: #{tpu_custom_call.1} parent=0
    #allocation2 [shape = 'u8[4096]{0}', space=vmem, size = 0x1000, scoped, tag = 'output window, operand 0, single buffered']
    #allocation3 [shape = 's32[1]{0}', space=sflag, size = 0x4, scoped, tag = 'scoped memory for tpu_custom_call.1']
    %7 = vsyncpa [#allocation3], 0
    // Predicated region
    $region2: #{tpu_custom_call.1} parent=1 // pred_check
      _
    $region3: #{tpu_custom_call.1} parent=1 // pred_check_branch
      %9 = sbr.rel (0) target = $region5
    $region4: #{tpu_custom_call.1} parent=1 // pred_region
      _
    $region5: #{tpu_custom_call.1} parent=1 // pred_fallthru
      _
    // Predicated region
    $region6: #{tpu_custom_call.1} parent=1 // pred_check
      _
    $region7: #{tpu_custom_call.1} parent=1 // pred_check_branch
      %11 = sbr.rel (0) target = $region9
    $region8: #{tpu_custom_call.1} parent=1 // pred_region
      _
    $region9: #{tpu_custom_call.1} parent=1 // pred_fallthru
      _
    %v12 = vld [vmem:[%s0] sm:$0xff]
    %v13 = vld [vmem:[%s1 + $0x4] sm:$0x1]
    %v14 = vld [vmem:[%s1] sm:$0x1]
    %16 = vset.pattern.permute.xlu0 0
    %17 = vperm.xlu0 %16, %v12
    %v18 = vpop.permute.xlu0 %17
    %v20 = vperm.slane %v14, 0
    %v21 = vmul.f32 %v18, %v20
    %v22 = vperm.slane %v13, 0
    %v23 = vadd.f32 %v22, %v21
    %v24 = vld [vmem:[%s1 + $0x1] sm:$0x1]
    %25 = vset.pattern.permute.xlu0 1
    %26 = vperm.xlu0 %25, %v12
    %v27 = vpop.permute.xlu0 %26
    %v29 = vperm.slane %v24, 0
    %v30 = vmul.f32 %v27, %v29
    %v31 = vadd.f32 %v23, %v30
    %v32 = vld [vmem:[%s1 + $0x2] sm:$0x1]
    %33 = vset.pattern.permute.xlu0 2
    %34 = vperm.xlu0 %33, %v12
    %v35 = vpop.permute.xlu0 %34
    %v37 = vperm.slane %v32, 0
    %v38 = vmul.f32 %v35, %v37
    %v39 = vadd.f32 %v31, %v38
    %v40 = vld [vmem:[%s1 + $0x3] sm:$0x1]
    %41 = vset.pattern.permute.xlu0 3
    %42 = vperm.xlu0 %41, %v12
    %v43 = vpop.permute.xlu0 %42
    %v45 = vperm.slane %v40, 0
    %v46 = vmul.f32 %v43, %v45
    %v47 = vadd.f32 %v39, %v46
    %v48 = vand.u32 2147483647, %v47
    %vm49 = vcmp.le.f32.partialorder %v48, 0.7853982
    %vm50 = vcmp.lt.s32.totalorder %v47, 0
    %v51 = vand.u32 %v47, 2139095040
    %v52 = vshrl.u32 %v51, 23
    %v53 = vsub.s32 %v52, 127
    %v54 = vand.u32 2147483647, %v47
    %v55 = vand.u32 %v54, 8388607
    %v56 = vor.u32 %v55, 8388608
    %v57 = vsub.s32 0, %v56
    %v58 = vadd.s32 %v53, 1
    %vm59 = vcmp.gt.s32.totalorder %v58, 0
    %v60 = vsel %vm59, %v58, 0
    %v61 = vshrl.u32 %v60, 5
    %v62 = vand.u32 %v60, 31
    %v63 = vsub.s32 32, %v62
    %v64 = vshrl.u32 683565275, %v63
    %v65 = vshll.u32 683565275, %v62
    %v66 = vshrl.u32 2475754826, %v63
    %v67 = vor.u32 %v65, %v66
    %v68 = vshll.u32 2475754826, %v62
    %v69 = vshrl.u32 2131351028, %v63
    %v70 = vor.u32 %v68, %v69
    %v71 = vshll.u32 2131351028, %v62
    %v72 = vshrl.u32 2102212464, %v63
    %v73 = vor.u32 %v71, %v72
    %v74 = vshll.u32 2102212464, %v62
    %v75 = vshrl.u32 920167782, %v63
    %v76 = vor.u32 %v74, %v75
    %v77 = vshll.u32 920167782, %v62
    %v78 = vshrl.u32 1326507024, %v63
    %v79 = vor.u32 %v77, %v78
    %vm80 = vcmp.lt.s32.totalorder %v61, 1
    %vm81 = vcmp.lt.s32.totalorder %v61, 2
    %vm82 = vcmp.lt.s32.totalorder %v61, 3
    %vm83 = vcmp.lt.s32.totalorder %v61, 4
    %v84 = vsel %vm80, %v64, %v67
    %v85 = vsel %vm83, %v73, 2102212464
    %v86 = vsel %vm82, %v70, %v85
    %v87 = vsel %vm81, %v84, %v86
    %v88 = vsel %vm80, %v67, %v70
    %v89 = vsel %vm83, %v76, 920167782
    %v90 = vsel %vm82, %v73, %v89
    %v91 = vsel %vm81, %v88, %v90
    %v92 = vsel %vm80, %v70, %v73
    %v93 = vsel %vm83, %v79, 1326507024
    %v94 = vsel %vm82, %v76, %v93
    %v95 = vsel %vm81, %v92, %v94
    %v96 = vshll.u32 %v56, 8
    %v97 = vand.u32 %v96, 65535
    %v98 = vshrl.u32 %v96, 16
    %v99 = vand.u32 %v95, 65535
    %v100 = vshrl.u32 %v95, 16
    %v101 = vmul.u32 %v97, %v99
    %v102 = vmul.u32 %v97, %v100
    %v103 = vmul.u32 %v98, %v99
    %v104 = vmul.u32 %v98, %v100
    %v105 = vshll.u32 %v102, 16
    %v106 = vshrl.u32 %v102, 16
    %v107 = vshll.u32 %v103, 16
    %v108 = vshrl.u32 %v103, 16
    %vm109 = vc.u32 %v101, %v105
    %v110 = vsel %vm109, 1, 0
    %v111 = vadd.s32 %v101, %v105
    %v112 = vadd.s32 %v104, %v110
    %vm113 = vc.u32 %v111, %v107
    %v114 = vsel %vm113, 1, 0
    %v115 = vadd.s32 %v111, %v107
    %v116 = vadd.s32 %v112, %v114
    %v117 = vadd.s32 %v116, %v106
    %v118 = vadd.s32 %v117, %v108
    %v119 = vand.u32 %v96, 65535
    %v120 = vshrl.u32 %v96, 16
    %v121 = vand.u32 %v91, 65535
    %v122 = vshrl.u32 %v91, 16
    %v123 = vmul.u32 %v119, %v121
    %v124 = vmul.u32 %v119, %v122
    %v125 = vmul.u32 %v120, %v121
    %v126 = vmul.u32 %v120, %v122
    %v127 = vshll.u32 %v124, 16
    %v128 = vshrl.u32 %v124, 16
    %v129 = vshll.u32 %v125, 16
    %v130 = vshrl.u32 %v125, 16
    %vm131 = vc.u32 %v123, %v127
    %v132 = vsel %vm131, 1, 0
    %v133 = vadd.s32 %v123, %v127
    %v134 = vadd.s32 %v126, %v132
    %vm135 = vc.u32 %v133, %v129
    %v136 = vsel %vm135, 1, 0
    %v137 = vadd.s32 %v133, %v129
    %v138 = vadd.s32 %v134, %v136
    %v139 = vadd.s32 %v138, %v128
    %v140 = vadd.s32 %v139, %v130
    %v141 = vmul.u32 %v96, %v87
    %v142 = vadd.s32 %v118, %v137
    %vm143 = vc.u32 %v118, %v137
    %v144 = vadd.s32 %v140, 1
    %v145 = vsel %vm143, %v144, %v140
    %v146 = vadd.s32 %v141, %v145
    %v147 = vadd.s32 %v146, 536870912
    %v148 = vshrl.u32 %v147, 30
    %v149 = vshll.u32 %v148, 30
    %v150 = vsub.s32 %v146, %v149
    %vm151 = vcmp.lt.s32.totalorder %v150, 0
    %v152 = vsub.s32 0, %v150
    %v153 = vsel %vm151, %v152, %v150
    %v154 = vclz %v153
    %v155 = vsub.s32 %v154, 2
    %vm156 = vcmp.gt.s32.totalorder 0, %v155
    %v157 = vsel %vm156, 0, %v155
    %v158 = vsub.s32 32, %v157
    %v159 = vshll.u32 %v150, %v157
    %v160 = vshrl.u32 %v142, %v158
    %v161 = vor.u32 %v159, %v160
    %v162 = vsub.s32 4294967266, %v157
    %v163 = vadd.s32 %v162, 127
    %v164 = vshll.u32 %v163, 23
    %v165 = vor.u32 4788187, %v164
    %v166 = vand.u32 2147483647, %v165
    %v168 = vcvt.s32.f32 %v161
    %v169 = vmul.f32 %v168, %v166
    %v170 = vxor.u32 %v169, 2147483648
    %v171 = vsel %vm50, %v170, %v169
    %v172 = vsub.s32 4, %v148
    %v173 = vsel %vm50, %v172, %v148
    %v174 = vsel %vm49, %v47, %v171
    %v175 = vsel %vm49, 0, %v173
    %v176 = vmul.f32 %v174, %v174
    %v177 = vmul.f32 %v176, -0.001358992
    %v178 = vadd.f32 %v177, 0.041655596
    %v179 = vmul.f32 %v176, %v178
    %v180 = vadd.f32 %v179, -0.4999988
    %v181 = vmul.f32 %v176, %v180
    %v182 = vadd.f32 1.0, %v181
    %v183 = vmul.f32 %v174, %v174
    %v184 = vmul.f32 %v183, -0.00019511016
    %v185 = vadd.f32 %v184, 0.008332121
    %v186 = vmul.f32 %v183, %v185
    %v187 = vadd.f32 %v186, -0.16666654
    %v188 = vmul.f32 %v183, %v187
    %v189 = vadd.f32 %v188, 1.0
    %v190 = vmul.f32 %v189, %v174
    %vm191 = vweird.f32 %v47
    %v192 = vadd.s32 %v175, 3
    %v193 = vand.u32 %v192, 3
    %vm194 = vcmp.lt.s32.totalorder %v193, 2
    %vm195 = vcmp.eq.s32.totalorder %v193, 0
    %v196 = vxor.u32 %v190, 2147483648
    %v197 = vsel %vm195, %v182, %v196
    %vm198 = vcmp.eq.s32.totalorder %v193, 2
    %v199 = vxor.u32 %v182, 2147483648
    %v200 = vsel %vm198, %v199, %v190
    %v201 = vsel %vm194, %v197, %v200
    %v202 = vsel %vm191, nan, %v201
    %203 = vst [vmem:[#allocation2] sm:$0xff] %v202
    // Predicated region
    $region10: #{tpu_custom_call.1} parent=1 // pred_check
      _
    $region11: #{tpu_custom_call.1} parent=1 // pred_check_branch
      %205 = sbr.rel (0) target = $region13
    $region12: #{tpu_custom_call.1} parent=1 // pred_region
      %207 = vsyncadd [#allocation3], 0
      %s209 = sshll.u32 [#allocation2], 4
      %s210 = int_to_ptr.vmem [resolvable:$true] %s209
      %s211 = sshll.u32 %s2, 4
      %s212 = int_to_ptr.hbm [resolvable:$true] %s211
      %214 = dma.vmem_to_hbm [thread:$0]  %s210, 128, %s212, [#allocation3]
    $region13: #{tpu_custom_call.1} parent=1 // pred_fallthru
      _
    // Predicated region
    $region14: #{tpu_custom_call.1} parent=1 // pred_check
      _
    $region15: #{tpu_custom_call.1} parent=1 // pred_check_branch
      %216 = sbr.rel (0) target = $region17
    $region16: #{tpu_custom_call.1} parent=1 // pred_region
      %218 = dma.done [#allocation3], 128
    $region17: #{tpu_custom_call.1} parent=1 // pred_fallthru
      _
    %219 = vsyncpa [#allocation3], 1

</llo_original>
